<compile_context>
chip_gen: v7x
topology: tpu7x:2x2x1
jax: 0.10.0
libtpu: 0.0.40
codegen_flags: <defaults>
</compile_context>

<pallas_src>
import functools

import jax
import jax.numpy as jnp
from jax import lax
from jax.experimental import pallas as pl
from jax.experimental.pallas import tpu as pltpu


def _gelu(x, approximate):
    if approximate:
        # tanh-approx GELU runs mostly on the (otherwise idle) EUP slot;
        # numerics differ slightly from PyTorch's default erf GELU.
        return jax.nn.gelu(x, approximate=True)
    # nn.GELU() default is the exact (erf-based) GELU.
    return 0.5 * x * (1.0 + lax.erf(x * 0.7071067811865476))


def _param_predictor_kernel(
    cl_ref, cs_ref,          # (c_half, tm) each   -- inputs
    wp_ref,                  # (4*C + Co, C)       -- packed weights
    bp_ref,                  # (4*C + Co, 1)       -- packed biases
    out_ref,                 # (Co, tm)            -- output
    xcat_ref,                # (C, tm) VMEM scratch
    *, c_half, n_feats, c_out, approximate_gelu,
):
    C = n_feats
    f32 = jnp.float32

    # One-time sublane concat of the two channel halves into the scratch:
    # implements torch.cat([C_l, C_s], dim=1) without any wrapper-side HBM
    # pass and lets every layer use its *unsplit* weight (single matmul).
    xcat_ref[pl.ds(0, c_half), :] = cl_ref[...].astype(f32)
    xcat_ref[pl.ds(c_half, c_half), :] = cs_ref[...].astype(f32)
    x1 = xcat_ref[...]                                     # (C, tm) f32

    def w(row0, rows):
        # Static slice of the packed weights: zero runtime cost.
        return wp_ref[pl.ds(row0, rows), :]

    def b(row0, rows):
        return bp_ref[pl.ds(row0, rows), :]                # (rows, 1)

    def mm(wm, x):
        # (C_out, K) @ (K, tm) -> (C_out, tm); pixels stay lane-dense.
        return jnp.dot(wm, x, preferred_element_type=jnp.float32)

    g = lambda t: _gelu(t, approximate_gelu)

    # conv1: three 1x1 convs + GELU.
    h = g(mm(w(0 * C, C), x1) + b(0 * C, C))
    h = g(mm(w(1 * C, C), h) + b(1 * C, C))
    x2 = g(mm(w(2 * C, C), h) + b(2 * C, C))

    # conv2 head on the residual x1 + x2.
    r = x1 + x2
    t = g(mm(w(3 * C, C), r) + b(3 * C, C))
    y = mm(w(4 * C, c_out), t) + b(4 * C, c_out)           # (Co, tm)
    out_ref[...] = y.astype(out_ref.dtype)


def parameter_predictor_pallas(C_l, C_s, params, *, tm=1024,
                               io_dtype=None, approximate_gelu=False):
    """C_l, C_s: NCHW, each with n_feats//2 channels.

    Weights are PyTorch-style (C_out, C_in); biases are (C_out, 1).
    io_dtype controls the HBM dtype of activations/output (compute stays f32);
    bf16 roughly halves HBM traffic on bandwidth-bound v5e/v6e.
    """
    N, c_half, H, W = C_l.shape
    C = 2 * c_half
    Co = params["w2b"].shape[0]
    HW = H * W
    if io_dtype is None:
        io_dtype = C_l.dtype

    # Pixel tile (lane axis): keep it a multiple of 128 whenever possible so
    # stores stay lane-dense; a ragged last block is padded/masked by Pallas.
    # Small enough (~512-1024) to avoid vreg spills.
    if HW >= 128:
        tm = max(128, min(tm, HW))
        tm -= tm % 128
    else:
        tm = HW  # full-axis block always satisfies the lane rule
    grid = (N, pl.cdiv(HW, tm))

    # Free views: NCHW -> (N, C/2, H*W); channels on sublanes, pixels on lanes.
    cl = C_l.reshape(N, c_half, HW).astype(io_dtype)
    cs = C_s.reshape(N, c_half, HW).astype(io_dtype)

    # Pack the 10 tiny weight/bias tensors into two arrays (one DMA each with
    # a constant index map) instead of 13-15 separate kernel inputs.
    wpack = jnp.concatenate(
        [params["w1a"], params["w1b"], params["w1c"],
         params["w2a"], params["w2b"]], axis=0).astype(jnp.float32)   # (4C+Co, C)
    bpack = jnp.concatenate(
        [params["b1a"], params["b1b"], params["b1c"],
         params["b2a"], params["b2b"]], axis=0).astype(jnp.float32)   # (4C+Co, 1)

    x_spec = pl.BlockSpec((None, c_half, tm), lambda n, i: (n, 0, i))
    o_spec = pl.BlockSpec((None, Co, tm), lambda n, i: (n, 0, i))
    w_spec = pl.BlockSpec(wpack.shape, lambda n, i: (0, 0))
    b_spec = pl.BlockSpec(bpack.shape, lambda n, i: (0, 0))

    kernel = functools.partial(
        _param_predictor_kernel,
        c_half=c_half, n_feats=C, c_out=Co, approximate_gelu=approximate_gelu)

    out3 = pl.pallas_call(
        kernel,
        out_shape=jax.ShapeDtypeStruct((N, Co, HW), io_dtype),
        grid_spec=pltpu.PrefetchScalarGridSpec(
            num_scalar_prefetch=0,
            grid=grid,
            in_specs=[x_spec, x_spec, w_spec, b_spec],
            out_specs=o_spec,
            scratch_shapes=[pltpu.VMEM((C, tm), jnp.float32)],
        ),
        compiler_params=pltpu.CompilerParams(
            dimension_semantics=("parallel", "parallel"),
        ),
    )(cl, cs, wpack, bpack)

    # (N, Co, H*W) -> NCHW: a free reshape, no transpose.
    return out3.reshape(N, Co, H, W)


def parameter_predictor_ref(C_l, C_s, params):
    """Pure-JAX reference (same math, plain jnp) for correctness checking."""
    N, c_half, H, W = C_l.shape
    x1 = jnp.concatenate(
        [C_l.reshape(N, c_half, -1), C_s.reshape(N, c_half, -1)], axis=1)

    def g(x):
        return 0.5 * x * (1.0 + lax.erf(x * 0.7071067811865476))

    def conv1x1(x, w, b):  # x: (N, Ci, P), w: (Co, Ci), b: (Co, 1)
        return jnp.einsum("oi,nip->nop", w, x) + b[None]

    h = g(conv1x1(x1, params["w1a"], params["b1a"]))
    h = g(conv1x1(h, params["w1b"], params["b1b"]))
    x2 = g(conv1x1(h, params["w1c"], params["b1c"]))
    r = x1 + x2
    y = conv1x1(g(conv1x1(r, params["w2a"], params["b2a"])),
                params["w2b"], params["b2b"])
    Co = params["w2b"].shape[0]
    return y.reshape(N, Co, H, W)


def init_params(key, n_feats, n_mixtures):
    """Deterministic synthetic init (Conv2d-like uniform fan-in scaling).

    Weights are (C_out, C_in) — PyTorch's 1x1 Conv2d weight squeezed — and
    biases are (C_out, 1) so they broadcast along the lane (pixel) axis.
    """
    C = n_feats
    Co = 3 * n_mixtures
    shapes = {
        "w1a": (C, C), "b1a": (C, 1),
        "w1b": (C, C), "b1b": (C, 1),
        "w1c": (C, C), "b1c": (C, 1),
        "w2a": (C, C), "b2a": (C, 1),
        "w2b": (Co, C), "b2b": (Co, 1),
    }
    params = {}
    keys = jax.random.split(key, len(shapes))
    bound = 1.0 / jnp.sqrt(C)
    for (name, shape), k in zip(shapes.items(), keys):
        params[name] = jax.random.uniform(
            k, shape, dtype=jnp.float32, minval=-bound, maxval=bound)
    return params


if __name__ == "__main__":
    # Small shapes consistent with the module:
    # n_feats = 8 total channels after concat -> C_l, C_s each have 4 channels.
    N, c_half, H, W = 2, 4, 16, 16
    n_feats = 2 * c_half
    n_mixtures = 3

    key = jax.random.PRNGKey(0)
    k_l, k_s, k_p = jax.random.split(key, 3)
    C_l = jax.random.normal(k_l, (N, c_half, H, W), dtype=jnp.float32)
    C_s = jax.random.normal(k_s, (N, c_half, H, W), dtype=jnp.float32)
    params = init_params(k_p, n_feats, n_mixtures)

    # 1) f32 end-to-end (exact erf GELU) vs. pure-JAX reference.
    out = jax.block_until_ready(parameter_predictor_pallas(C_l, C_s, params))
    ref = jax.block_until_ready(parameter_predictor_ref(C_l, C_s, params))
    assert out.shape == (N, 3 * n_mixtures, H, W), out.shape
    max_err = float(jnp.max(jnp.abs(out - ref)))
    assert jnp.allclose(out, ref, atol=1e-4, rtol=1e-4), f"mismatch: {max_err}"

    # 2) Ragged pixel count (H*W = 144, not a multiple of tm=128): exercises
    #    the padded/masked last lane block instead of the old tm=HW fallback.
    H2, W2 = 12, 12
    C_l2 = jax.random.normal(k_l, (N, c_half, H2, W2), dtype=jnp.float32)
    C_s2 = jax.random.normal(k_s, (N, c_half, H2, W2), dtype=jnp.float32)
    out2 = jax.block_until_ready(
        parameter_predictor_pallas(C_l2, C_s2, params, tm=128))
    ref2 = parameter_predictor_ref(C_l2, C_s2, params)
    max_err2 = float(jnp.max(jnp.abs(out2 - ref2)))
    assert jnp.allclose(out2, ref2, atol=1e-4, rtol=1e-4), f"ragged: {max_err2}"

    # 3) bf16 HBM I/O (f32 compute in-kernel): the v5e/v6e bandwidth option.
    out_bf = jax.block_until_ready(
        parameter_predictor_pallas(C_l, C_s, params, io_dtype=jnp.bfloat16))
    bf_err = float(jnp.max(jnp.abs(out_bf.astype(jnp.float32) - ref)))
    assert bf_err < 0.1, f"bf16 io error too large: {bf_err}"

    print("KERNEL_OK")
</pallas_src>

<mosaic_0001>
module attributes {stable_mosaic.version = 11 : i64} {
  func.func @_param_predictor_kernel(%arg0: i32, %arg1: i32, %arg2: memref<1x4x256xf32, #tpu.memory_space<vmem>>, %arg3: memref<1x4x256xf32, #tpu.memory_space<vmem>>, %arg4: memref<41x8xf32, #tpu.memory_space<vmem>>, %arg5: memref<41x1xf32, #tpu.memory_space<vmem>>, %arg6: memref<1x9x256xf32, #tpu.memory_space<vmem>>, %arg7: memref<8x256xf32, #tpu.memory_space<vmem>>) attributes {dimension_semantics = [#tpu.dimension_semantics<parallel>, #tpu.dimension_semantics<parallel>], iteration_bounds = array<i64: 2, 1>, scalar_prefetch = 0 : i64, scratch_operands = 1 : i64, tpu.core_type = #tpu.core_type<tc>, window_params = [{transform_indices = @transform_0, window_bounds = array<i64: 1, 4, 256>}, {transform_indices = @transform_1, window_bounds = array<i64: 1, 4, 256>}, {pipeline_mode = #tpu.pipeline_mode<synchronous>, transform_indices = @transform_2, window_bounds = array<i64: 41, 8>}, {pipeline_mode = #tpu.pipeline_mode<synchronous>, transform_indices = @transform_3, window_bounds = array<i64: 41, 1>}, {transform_indices = @transform_4, window_bounds = array<i64: 1, 9, 256>}]} {
    %c0 = arith.constant 0 : index
    %c0_0 = arith.constant 0 : index
    %c0_1 = arith.constant 0 : index
    %0 = vector.load %arg2[%c0, %c0_0, %c0_1] : memref<1x4x256xf32, #tpu.memory_space<vmem>>, vector<1x4x256xf32>
    %1 = vector.shape_cast %0 : vector<1x4x256xf32> to vector<4x256xf32>
    %c0_2 = arith.constant 0 : index
    %c0_3 = arith.constant 0 : index
    %2 = vector.load %arg7[%c0_2, %c0_3] : memref<8x256xf32, #tpu.memory_space<vmem>>, vector<4x256xf32>
    tpu.vector_store %arg7[%c0_2, %c0_3], %1 {strides = array<i32>} : memref<8x256xf32, #tpu.memory_space<vmem>>, vector<4x256xf32>,
    %c0_4 = arith.constant 0 : index
    %c0_5 = arith.constant 0 : index
    %c0_6 = arith.constant 0 : index
    %3 = vector.load %arg3[%c0_4, %c0_5, %c0_6] : memref<1x4x256xf32, #tpu.memory_space<vmem>>, vector<1x4x256xf32>
    %4 = vector.shape_cast %3 : vector<1x4x256xf32> to vector<4x256xf32>
    %c4 = arith.constant 4 : index
    %c0_7 = arith.constant 0 : index
    %5 = vector.load %arg7[%c4, %c0_7] : memref<8x256xf32, #tpu.memory_space<vmem>>, vector<4x256xf32>
    tpu.vector_store %arg7[%c4, %c0_7], %4 {strides = array<i32>} : memref<8x256xf32, #tpu.memory_space<vmem>>, vector<4x256xf32>,
    %c0_8 = arith.constant 0 : index
    %c0_9 = arith.constant 0 : index
    %6 = vector.load %arg7[%c0_8, %c0_9] : memref<8x256xf32, #tpu.memory_space<vmem>>, vector<8x256xf32>
    %c0_10 = arith.constant 0 : index
    %c0_11 = arith.constant 0 : index
    %7 = vector.load %arg4[%c0_10, %c0_11] : memref<41x8xf32, #tpu.memory_space<vmem>>, vector<8x8xf32>
    %cst = arith.constant dense<0.000000e+00> : vector<8x256xf32>
    %8 = tpu.matmul %7, %6, %cst {dimension_numbers = #tpu.dot_dimension_numbers<[1], [0], [0], [1], [0, 0, 1, 1], [], []>} : vector<8x8xf32>, vector<8x256xf32>, vector<8x256xf32> -> vector<8x256xf32>
    %c0_12 = arith.constant 0 : index
    %c0_13 = arith.constant 0 : index
    %9 = vector.load %arg5[%c0_12, %c0_13] : memref<41x1xf32, #tpu.memory_space<vmem>>, vector<8x1xf32>
    %10 = vector.broadcast %9 : vector<8x1xf32> to vector<8x256xf32>
    %11 = arith.addf %8, %10 : vector<8x256xf32>
    %cst_14 = arith.constant 5.000000e-01 : f32
    %12 = vector.broadcast %cst_14 : f32 to vector<8x256xf32>
    %13 = arith.mulf %12, %11 : vector<8x256xf32>
    %cst_15 = arith.constant 0.707106769 : f32
    %14 = vector.broadcast %cst_15 : f32 to vector<8x256xf32>
    %15 = arith.mulf %11, %14 : vector<8x256xf32>
    %16 = math.erf %15 : vector<8x256xf32>
    %cst_16 = arith.constant 1.000000e+00 : f32
    %17 = vector.broadcast %cst_16 : f32 to vector<8x256xf32>
    %18 = arith.addf %17, %16 : vector<8x256xf32>
    %19 = arith.mulf %13, %18 : vector<8x256xf32>
    %c8 = arith.constant 8 : index
    %c0_17 = arith.constant 0 : index
    %20 = vector.load %arg4[%c8, %c0_17] : memref<41x8xf32, #tpu.memory_space<vmem>>, vector<8x8xf32>
    %cst_18 = arith.constant dense<0.000000e+00> : vector<8x256xf32>
    %21 = tpu.matmul %20, %19, %cst_18 {dimension_numbers = #tpu.dot_dimension_numbers<[1], [0], [0], [1], [0, 0, 1, 1], [], []>} : vector<8x8xf32>, vector<8x256xf32>, vector<8x256xf32> -> vector<8x256xf32>
    %c8_19 = arith.constant 8 : index
    %c0_20 = arith.constant 0 : index
    %22 = vector.load %arg5[%c8_19, %c0_20] : memref<41x1xf32, #tpu.memory_space<vmem>>, vector<8x1xf32>
    %23 = vector.broadcast %22 : vector<8x1xf32> to vector<8x256xf32>
    %24 = arith.addf %21, %23 : vector<8x256xf32>
    %cst_21 = arith.constant 5.000000e-01 : f32
    %25 = vector.broadcast %cst_21 : f32 to vector<8x256xf32>
    %26 = arith.mulf %25, %24 : vector<8x256xf32>
    %cst_22 = arith.constant 0.707106769 : f32
    %27 = vector.broadcast %cst_22 : f32 to vector<8x256xf32>
    %28 = arith.mulf %24, %27 : vector<8x256xf32>
    %29 = math.erf %28 : vector<8x256xf32>
    %cst_23 = arith.constant 1.000000e+00 : f32
    %30 = vector.broadcast %cst_23 : f32 to vector<8x256xf32>
    %31 = arith.addf %30, %29 : vector<8x256xf32>
    %32 = arith.mulf %26, %31 : vector<8x256xf32>
    %c16 = arith.constant 16 : index
    %c0_24 = arith.constant 0 : index
    %33 = vector.load %arg4[%c16, %c0_24] : memref<41x8xf32, #tpu.memory_space<vmem>>, vector<8x8xf32>
    %cst_25 = arith.constant dense<0.000000e+00> : vector<8x256xf32>
    %34 = tpu.matmul %33, %32, %cst_25 {dimension_numbers = #tpu.dot_dimension_numbers<[1], [0], [0], [1], [0, 0, 1, 1], [], []>} : vector<8x8xf32>, vector<8x256xf32>, vector<8x256xf32> -> vector<8x256xf32>
    %c16_26 = arith.constant 16 : index
    %c0_27 = arith.constant 0 : index
    %35 = vector.load %arg5[%c16_26, %c0_27] : memref<41x1xf32, #tpu.memory_space<vmem>>, vector<8x1xf32>
    %36 = vector.broadcast %35 : vector<8x1xf32> to vector<8x256xf32>
    %37 = arith.addf %34, %36 : vector<8x256xf32>
    %cst_28 = arith.constant 5.000000e-01 : f32
    %38 = vector.broadcast %cst_28 : f32 to vector<8x256xf32>
    %39 = arith.mulf %38, %37 : vector<8x256xf32>
    %cst_29 = arith.constant 0.707106769 : f32
    %40 = vector.broadcast %cst_29 : f32 to vector<8x256xf32>
    %41 = arith.mulf %37, %40 : vector<8x256xf32>
    %42 = math.erf %41 : vector<8x256xf32>
    %cst_30 = arith.constant 1.000000e+00 : f32
    %43 = vector.broadcast %cst_30 : f32 to vector<8x256xf32>
    %44 = arith.addf %43, %42 : vector<8x256xf32>
    %45 = arith.mulf %39, %44 : vector<8x256xf32>
    %46 = arith.addf %6, %45 : vector<8x256xf32>
    %c24 = arith.constant 24 : index
    %c0_31 = arith.constant 0 : index
    %47 = vector.load %arg4[%c24, %c0_31] : memref<41x8xf32, #tpu.memory_space<vmem>>, vector<8x8xf32>
    %cst_32 = arith.constant dense<0.000000e+00> : vector<8x256xf32>
    %48 = tpu.matmul %47, %46, %cst_32 {dimension_numbers = #tpu.dot_dimension_numbers<[1], [0], [0], [1], [0, 0, 1, 1], [], []>} : vector<8x8xf32>, vector<8x256xf32>, vector<8x256xf32> -> vector<8x256xf32>
    %c24_33 = arith.constant 24 : index
    %c0_34 = arith.constant 0 : index
    %49 = vector.load %arg5[%c24_33, %c0_34] : memref<41x1xf32, #tpu.memory_space<vmem>>, vector<8x1xf32>
    %50 = vector.broadcast %49 : vector<8x1xf32> to vector<8x256xf32>
    %51 = arith.addf %48, %50 : vector<8x256xf32>
    %cst_35 = arith.constant 5.000000e-01 : f32
    %52 = vector.broadcast %cst_35 : f32 to vector<8x256xf32>
    %53 = arith.mulf %52, %51 : vector<8x256xf32>
    %cst_36 = arith.constant 0.707106769 : f32
    %54 = vector.broadcast %cst_36 : f32 to vector<8x256xf32>
    %55 = arith.mulf %51, %54 : vector<8x256xf32>
    %56 = math.erf %55 : vector<8x256xf32>
    %cst_37 = arith.constant 1.000000e+00 : f32
    %57 = vector.broadcast %cst_37 : f32 to vector<8x256xf32>
    %58 = arith.addf %57, %56 : vector<8x256xf32>
    %59 = arith.mulf %53, %58 : vector<8x256xf32>
    %c32 = arith.constant 32 : index
    %c0_38 = arith.constant 0 : index
    %60 = vector.load %arg4[%c32, %c0_38] : memref<41x8xf32, #tpu.memory_space<vmem>>, vector<9x8xf32>
    %cst_39 = arith.constant dense<0.000000e+00> : vector<9x256xf32>
    %61 = tpu.matmul %60, %59, %cst_39 {dimension_numbers = #tpu.dot_dimension_numbers<[1], [0], [0], [1], [0, 0, 1, 1], [], []>} : vector<9x8xf32>, vector<8x256xf32>, vector<9x256xf32> -> vector<9x256xf32>
    %c32_40 = arith.constant 32 : index
    %c0_41 = arith.constant 0 : index
    %62 = vector.load %arg5[%c32_40, %c0_41] : memref<41x1xf32, #tpu.memory_space<vmem>>, vector<9x1xf32>
    %63 = vector.broadcast %62 : vector<9x1xf32> to vector<9x256xf32>
    %64 = arith.addf %61, %63 : vector<9x256xf32>
    %c0_42 = arith.constant 0 : index
    %c0_43 = arith.constant 0 : index
    %c0_44 = arith.constant 0 : index
    %65 = vector.load %arg6[%c0_42, %c0_43, %c0_44] : memref<1x9x256xf32, #tpu.memory_space<vmem>>, vector<1x9x256xf32>
    %66 = vector.shape_cast %65 : vector<1x9x256xf32> to vector<9x256xf32>
    %67 = vector.shape_cast %64 : vector<9x256xf32> to vector<1x9x256xf32>
    tpu.vector_store %arg6[%c0_42, %c0_43, %c0_44], %67 {strides = array<i32>} : memref<1x9x256xf32, #tpu.memory_space<vmem>>, vector<1x9x256xf32>,
    return
  }
  func.func @transform_0(%arg0: i32, %arg1: i32) -> (i32, i32, i32) {
    %c0_i32 = arith.constant 0 : i32
    %c0_i32_0 = arith.constant 0 : i32
    return %arg0, %c0_i32, %arg1 : i32, i32, i32
  }
  func.func @transform_1(%arg0: i32, %arg1: i32) -> (i32, i32, i32) {
    %c0_i32 = arith.constant 0 : i32
    %c0_i32_0 = arith.constant 0 : i32
    return %arg0, %c0_i32, %arg1 : i32, i32, i32
  }
  func.func @transform_2(%arg0: i32, %arg1: i32) -> (i32, i32) {
    %c0_i32 = arith.constant 0 : i32
    %c0_i32_0 = arith.constant 0 : i32
    %c0_i32_1 = arith.constant 0 : i32
    return %c0_i32, %c0_i32_0 : i32, i32
  }
  func.func @transform_3(%arg0: i32, %arg1: i32) -> (i32, i32) {
    %c0_i32 = arith.constant 0 : i32
    %c0_i32_0 = arith.constant 0 : i32
    %c0_i32_1 = arith.constant 0 : i32
    return %c0_i32, %c0_i32_0 : i32, i32
  }
  func.func @transform_4(%arg0: i32, %arg1: i32) -> (i32, i32, i32) {
    %c0_i32 = arith.constant 0 : i32
    %c0_i32_0 = arith.constant 0 : i32
    return %arg0, %c0_i32, %arg1 : i32, i32, i32
  }
}

</mosaic_0001>

<llo_original>
// kernel: tpu_custom_call.1
$region0: #{tpu_custom_call.1}
  #allocation0 [shape = 'u32[]', space=smem, size = 0x4, offset = 0x4, fixed_abs, tag = 'smem constant byte address 0x4 - core index']
  #allocation1 [shape = 'u32[144,128]{1,0:T(1,128)}', space=vmem, size = 0x12000, scoped, tag = 'internal scratch']
  #allocation2 [shape = 'f32[8,256]{1,0:T(8,128)}', space=vmem, size = 0x2000, scoped, tag = 'scratch operand']
  %s0 = inlined_call_operand.vmem [shape: f32[2,4,256], index: 0, kind: input, shape index: {}]
  %s1 = inlined_call_operand.vmem [shape: f32[2,4,256], index: 1, kind: input, shape index: {}]
  %s2 = inlined_call_operand.vmem [shape: f32[41,8], index: 2, kind: input, shape index: {}]
  %s3 = inlined_call_operand.vmem [shape: f32[41,1], index: 3, kind: input, shape index: {}]
  %s4 = inlined_call_operand.vmem [shape: f32[2,9,256], index: 4, kind: output, shape index: {}]
  %s5 = sld [smem:[#allocation0]]
  $region49: #{tpu_custom_call.1} parent=0
    _
  %s7 = ssub.s32 1, %s5
  %s8 = scalar_select 0, %s7, %s5
  loop: start=0, step=1, limit=4
  $region2: #{tpu_custom_call.1} parent=0 // loop_pre_header
    _
  $region3: #{tpu_custom_call.1} parent=0 // loop_header
    %s10 = sphi 0, %s14
    %p11 = scmp.ge.s32.totalorder %s10, 4
    %s17 = sphi 0, %s29
    %s18 = sphi 0, %s25
    %s19 = sphi 0, %s17
    %s20 = sphi 0, %s18
    %s21 = sphi 0, %s19
    %s22 = sphi 0, %s20
    %s34 = sphi 0, %s36
    %s37 = sphi 0, %s34
    %s38 = sphi 0, %s37
    %s54 = sphi 0, %s38
    %s62 = sphi 0, %s64
    %s65 = sphi 0, %s62
    %s66 = sphi 0, %s65
    %s82 = sphi 0, %s66
    %s86 = sphi 0, %s86
    %s88 = sphi 0, %s86
    %s89 = sphi 0, %s88
    %s103 = sphi 0, %s89
    %s107 = sphi 0, %s107
    %s109 = sphi 0, %s107
    %s110 = sphi 0, %s109
    %s124 = sphi 0, %s110
    %s132 = sphi 0, %s134
    %s135 = sphi 0, %s132
    %s136 = sphi 0, %s135
    %s152 = sphi 0, %s136
  $region4: #{tpu_custom_call.1} parent=0 // loop_header_branch
    %13 = sbr.rel (%p11) target = $region8
  $region5: #{tpu_custom_call.1} parent=0 // loop_body
    %s15 = ssub.s32 %s10, 1
    %s16 = ssub.s32 %s10, 2
    %s23 = sadd.s32 1, %s18
    %p24 = scmp.ge.s32.totalorder %s23, 1
    %s25 = scalar_select %p24, 0, %s23
    %s26 = sadd.s32 1, %s17
    %s27 = scalar_select %p24, %s26, %s17
    %p28 = scmp.ge.s32.totalorder %s27, 2
    %s29 = scalar_select %p28, 0, %s27
    %s30 = ssub.s32 %s17, %s29
    %s31 = ssub.s32 %s18, %s25
    %s32 = sor.u32 %s30, %s31
    %p33 = scmp.eq.s32.totalorder %s32, 0
    %s35 = sadd.s32 %s34, 1
    %s36 = scalar_select %p33, %s34, %s35
    %p39 = pneg %p33
    %p40 = scmp.eq.s32.totalorder %s10, 1
    %p41 = por %p39, %p40
    %p42 = scmp.ne.s32.totalorder %s34, %s37
    %p43 = scmp.eq.s32.totalorder %s10, 0
    %p44 = por %p42, %p43
    %p45 = scmp.ne.s32.totalorder %s34, %s37
    %p46 = scmp.eq.s32.totalorder %s15, 1
    %p47 = por %p45, %p46
    %p48 = scmp.ne.s32.totalorder %s37, %s38
    %p49 = scmp.eq.s32.totalorder %s15, 0
    %p50 = por %p48, %p49
    %p51 = scmp.ne.s32.totalorder %s37, %s38
    %p52 = scmp.eq.s32.totalorder %s16, 1
    %p53 = por %p51, %p52
    %p55 = scmp.ne.s32.totalorder %s38, %s54
    %p56 = scmp.eq.s32.totalorder %s16, 0
    %p57 = por %p55, %p56
    %s58 = ssub.s32 %s17, %s29
    %s59 = ssub.s32 %s18, %s25
    %s60 = sor.u32 %s58, %s59
    %p61 = scmp.eq.s32.totalorder %s60, 0
    %s63 = sadd.s32 %s62, 1
    %s64 = scalar_select %p61, %s62, %s63
    %p67 = pneg %p61
    %p68 = scmp.eq.s32.totalorder %s10, 1
    %p69 = por %p67, %p68
    %p70 = scmp.ne.s32.totalorder %s62, %s65
    %p71 = scmp.eq.s32.totalorder %s10, 0
    %p72 = por %p70, %p71
    %p73 = scmp.ne.s32.totalorder %s62, %s65
    %p74 = scmp.eq.s32.totalorder %s15, 1
    %p75 = por %p73, %p74
    %p76 = scmp.ne.s32.totalorder %s65, %s66
    %p77 = scmp.eq.s32.totalorder %s15, 0
    %p78 = por %p76, %p77
    %p79 = scmp.ne.s32.totalorder %s65, %s66
    %p80 = scmp.eq.s32.totalorder %s16, 1
    %p81 = por %p79, %p80
    %p83 = scmp.ne.s32.totalorder %s66, %s82
    %p84 = scmp.eq.s32.totalorder %s16, 0
    %p85 = por %p83, %p84
    %s87 = sadd.s32 %s86, 1
    %p90 = scmp.eq.s32.totalorder %s10, 1
    %p91 = scmp.ne.s32.totalorder %s86, %s88
    %p92 = scmp.eq.s32.totalorder %s10, 0
    %p93 = por %p91, %p92
    %p94 = scmp.ne.s32.totalorder %s86, %s88
    %p95 = scmp.eq.s32.totalorder %s15, 1
    %p96 = por %p94, %p95
    %p97 = scmp.ne.s32.totalorder %s88, %s89
    %p98 = scmp.eq.s32.totalorder %s15, 0
    %p99 = por %p97, %p98
    %p100 = scmp.ne.s32.totalorder %s88, %s89
    %p101 = scmp.eq.s32.totalorder %s16, 1
    %p102 = por %p100, %p101
    %p104 = scmp.ne.s32.totalorder %s89, %s103
    %p105 = scmp.eq.s32.totalorder %s16, 0
    %p106 = por %p104, %p105
    %s108 = sadd.s32 %s107, 1
    %p111 = scmp.eq.s32.totalorder %s10, 1
    %p112 = scmp.ne.s32.totalorder %s107, %s109
    %p113 = scmp.eq.s32.totalorder %s10, 0
    %p114 = por %p112, %p113
    %p115 = scmp.ne.s32.totalorder %s107, %s109
    %p116 = scmp.eq.s32.totalorder %s15, 1
    %p117 = por %p115, %p116
    %p118 = scmp.ne.s32.totalorder %s109, %s110
    %p119 = scmp.eq.s32.totalorder %s15, 0
    %p120 = por %p118, %p119
    %p121 = scmp.ne.s32.totalorder %s109, %s110
    %p122 = scmp.eq.s32.totalorder %s16, 1
    %p123 = por %p121, %p122
    %p125 = scmp.ne.s32.totalorder %s110, %s124
    %p126 = scmp.eq.s32.totalorder %s16, 0
    %p127 = por %p125, %p126
    %s128 = ssub.s32 %s17, %s29
    %s129 = ssub.s32 %s18, %s25
    %s130 = sor.u32 %s128, %s129
    %p131 = scmp.eq.s32.totalorder %s130, 0
    %s133 = sadd.s32 %s132, 1
    %s134 = scalar_select %p131, %s132, %s133
    %p137 = pneg %p131
    %p138 = scmp.eq.s32.totalorder %s10, 1
    %p139 = por %p137, %p138
    %p140 = scmp.ne.s32.totalorder %s132, %s135
    %p141 = scmp.eq.s32.totalorder %s10, 0
    %p142 = por %p140, %p141
    %p143 = scmp.ne.s32.totalorder %s132, %s135
    %p144 = scmp.eq.s32.totalorder %s15, 1
    %p145 = por %p143, %p144
    %p146 = scmp.ne.s32.totalorder %s135, %s136
    %p147 = scmp.eq.s32.totalorder %s15, 0
    %p148 = por %p146, %p147
    %p149 = scmp.ne.s32.totalorder %s135, %s136
    %p150 = scmp.eq.s32.totalorder %s16, 1
    %p151 = por %p149, %p150
    %p153 = scmp.ne.s32.totalorder %s136, %s152
    %p154 = scmp.eq.s32.totalorder %s16, 0
    %p155 = por %p153, %p154
    %p156 = scmp.le.s32.totalorder 1, %s10
    %p157 = scmp.lt.s32.totalorder %s10, 3
    %p158 = pnand %p156, %p157
    %p159 = pneg %p158
    // Predicated region
    $region9: #{tpu_custom_call.1} parent=5 // pred_check
      _
    $region10: #{tpu_custom_call.1} parent=5 // pred_check_branch
      %161 = sbr.rel (%p158) target = $region12
    $region11: #{tpu_custom_call.1} parent=5 // pred_region
      %s162 = ssub.s32 %s10, 1
      // Predicated region
      $region13: #{tpu_custom_call.1} parent=11 // pred_check
        %p163 = pneg %p99
      $region14: #{tpu_custom_call.1} parent=11 // pred_check_branch
        %165 = sbr.rel (%p163) target = $region16
      $region15: #{tpu_custom_call.1} parent=11 // pred_region
        _
      $region16: #{tpu_custom_call.1} parent=11 // pred_fallthru
        _
      // Predicated region
      $region17: #{tpu_custom_call.1} parent=11 // pred_check
        %p166 = pneg %p120
      $region18: #{tpu_custom_call.1} parent=11 // pred_check_branch
        %168 = sbr.rel (%p166) target = $region20
      $region19: #{tpu_custom_call.1} parent=11 // pred_region
        _
      $region20: #{tpu_custom_call.1} parent=11 // pred_fallthru
        _
    $region12: #{tpu_custom_call.1} parent=5 // pred_fallthru
      _
    %p169 = scmp.lt.s32.totalorder %s10, 2
    // Predicated region
    $region21: #{tpu_custom_call.1} parent=5 // pred_check
      %p170 = pneg %p169
    $region22: #{tpu_custom_call.1} parent=5 // pred_check_branch
      %172 = sbr.rel (%p170) target = $region24
    $region23: #{tpu_custom_call.1} parent=5 // pred_region
      // Predicated region
      $region25: #{tpu_custom_call.1} parent=23 // pred_check
        %p173 = pneg %p44
      $region26: #{tpu_custom_call.1} parent=23 // pred_check_branch
        %175 = sbr.rel (%p173) target = $region28
      $region27: #{tpu_custom_call.1} parent=23 // pred_region
        %s176 = smul.u32 2, %s18
        %p177 = scmp.lt.s32.totalorder %s17, 1
        %s178 = scalar_select %p177, %s17, 1
        %p179 = scmp.lt.s32.totalorder %s176, 1
        %s180 = scalar_select %p179, %s176, 1
        %s181 = smul.addr %s178, 2
        %s182 = sadd.s32 %s180, %s181
        %s183 = smul.addr %s182, 4
        %s184 = scalar_lea.vmem %s0, %s183
        %s185 = smul.u32 2, %s18
      $region28: #{tpu_custom_call.1} parent=23 // pred_fallthru
        _
      // Predicated region
      $region29: #{tpu_custom_call.1} parent=23 // pred_check
        %p186 = pneg %p72
      $region30: #{tpu_custom_call.1} parent=23 // pred_check_branch
        %188 = sbr.rel (%p186) target = $region32
      $region31: #{tpu_custom_call.1} parent=23 // pred_region
        %s189 = smul.u32 2, %s18
        %p190 = scmp.lt.s32.totalorder %s17, 1
        %s191 = scalar_select %p190, %s17, 1
        %p192 = scmp.lt.s32.totalorder %s189, 1
        %s193 = scalar_select %p192, %s189, 1
        %s194 = smul.addr %s191, 2
        %s195 = sadd.s32 %s193, %s194
        %s196 = smul.addr %s195, 4
        %s197 = scalar_lea.vmem %s1, %s196
        %s198 = smul.u32 2, %s18
      $region32: #{tpu_custom_call.1} parent=23 // pred_fallthru
        _
    $region24: #{tpu_custom_call.1} parent=5 // pred_fallthru
      _
    %p199 = scmp.le.s32.totalorder 1, %s10
    %p200 = scmp.lt.s32.totalorder %s10, 3
    %p201 = pnand %p199, %p200
    %p202 = pneg %p201
    // Predicated region
    $region33: #{tpu_custom_call.1} parent=5 // pred_check
      _
    $region34: #{tpu_custom_call.1} parent=5 // pred_check_branch
      %204 = sbr.rel (%p201) target = $region36
    $region35: #{tpu_custom_call.1} parent=5 // pred_region
      %s205 = ssub.s32 %s10, 1
      %s206 = smul.u32 2, %s20
      %p207 = scmp.lt.s32.totalorder %s19, 1
      %s208 = scalar_select %p207, %s19, 1
      %p209 = scmp.lt.s32.totalorder %s206, 1
      %s210 = scalar_select %p209, %s206, 1
      %s211 = smul.addr %s208, 2
      %s212 = sadd.s32 %s210, %s211
      %s213 = smul.addr %s212, 4
      %s214 = scalar_lea.vmem %s0, %s213
      %p215 = pneg %p50
      %p216 = pneg %p47
      %s217 = smul.u32 2, %s20
      %p218 = scmp.lt.s32.totalorder %s19, 1
      %s219 = scalar_select %p218, %s19, 1
      %p220 = scmp.lt.s32.totalorder %s217, 1
      %s221 = scalar_select %p220, %s217, 1
      %s222 = smul.addr %s219, 2
      %s223 = sadd.s32 %s221, %s222
      %s224 = smul.addr %s223, 4
      %s225 = scalar_lea.vmem %s1, %s224
      %p226 = pneg %p78
      %p227 = pneg %p75
      %p228 = pneg %p99
      %p229 = pneg %p96
      %p230 = pneg %p120
      %p231 = pneg %p117
      %p232 = pneg %p148
      %p233 = pneg %p145
      %s234 = smul.u32 2, %s20
      %p235 = scmp.lt.s32.totalorder %s19, 1
      %s236 = scalar_select %p235, %s19, 1
      %p237 = scmp.lt.s32.totalorder %s234, 1
      %s238 = scalar_select %p237, %s234, 1
      %s239 = smul.addr %s236, 4
      %s240 = sadd.s32 %s238, %s239
      %s241 = smul.addr %s240, 8
      %s242 = scalar_lea.vmem %s4, %s241
      %s243 = smul.u32 2, %s20
      %p244 = scmp.lt.s32.totalorder %s19, 1
      %s245 = scalar_select %p244, %s19, 1
      %p246 = scmp.lt.s32.totalorder %s243, 1
      %s247 = scalar_select %p246, %s243, 1
      %s248 = smul.addr %s245, 2
      %s249 = sadd.s32 %s247, %s248
      %s250 = smul.addr %s249, 4
      %s251 = scalar_lea.vmem %s0, %s250
      %s252 = smul.u32 2, %s20
      %s253 = smul.u32 2, %s20
      %p254 = scmp.lt.s32.totalorder %s19, 1
      %s255 = scalar_select %p254, %s19, 1
      %p256 = scmp.lt.s32.totalorder %s253, 1
      %s257 = scalar_select %p256, %s253, 1
      %s258 = smul.addr %s255, 2
      %s259 = sadd.s32 %s257, %s258
      %s260 = smul.addr %s259, 4
      %s261 = scalar_lea.vmem %s1, %s260
      %s262 = smul.u32 2, %s20
      %s263 = smul.u32 2, %s20
      %p264 = scmp.lt.s32.totalorder %s19, 1
      %s265 = scalar_select %p264, %s19, 1
      %p266 = scmp.lt.s32.totalorder %s263, 1
      %s267 = scalar_select %p266, %s263, 1
      %s268 = smul.addr %s265, 4
      %s269 = sadd.s32 %s267, %s268
      %s270 = smul.addr %s269, 8
      %s271 = scalar_lea.vmem %s4, %s270
      %s272 = smul.u32 2, %s20
      %v273 = vld [vmem:[%s251] sm:$0xff]
      %v275 = vcombine.high %v273, %v273
      %277 = vst [vmem:[#allocation2] sm:$0xf] %v273
      %278 = vst [vmem:[#allocation2 + $0x8] sm:$0xf] %v275
      %v279 = vld [vmem:[%s261] sm:$0xff]
      %v281 = vcombine.low %v279, %v279
      %283 = vst [vmem:[#allocation2] sm:$0xf0] %v281
      %284 = vst [vmem:[#allocation2 + $0x8] sm:$0xf0] %v279
      %v285 = vld [vmem:[#allocation2] sm:$0xff]
      %v286 = vld [vmem:[#allocation2 + $0x8] sm:$0xff]
      %v287 = vld [vmem:[%s2] sm:$0xff]
      %v288 = vld [vmem:[%s3] sm:$0xff]
      %290 = vset.pattern.permute.xlu0 0
      %291 = vperm.xlu0 %290, %v288
      %v292 = vpop.permute.xlu0 %291
      %vm294 = vcmask 64512
      %v296 = vsel %vm294, %v287, 0
      %298 = vmatprep.subr.mxu0 %v286
      %299 = vmatpush1.msra.mxu0 %v285
      %300 = vmatprep.subr.mxu0 0.0
      %301 = vmatpush1.msra.mxu0 0.0
      %302 = vmatprep.subr.mxu0 0.0
      %303 = vmatpush1.msra.mxu0 0.0
      %304 = vmatprep.subr.mxu0 0.0
      %305 = vmatpush1.msra.mxu0 0.0
      %306 = vmatprep.subr.mxu0 0.0
      %307 = vmatpush1.msra.mxu0 0.0
      %308 = vmatprep.subr.mxu0 0.0
      %309 = vmatpush1.msra.mxu0 0.0
      %310 = vmatprep.subr.mxu0 0.0
      %311 = vmatpush1.msra.mxu0 0.0
      %312 = vmatprep.subr.mxu0 0.0
      %313 = vmatpush1.msra.mxu0 0.0
      %314 = vmatprep.subr.mxu0 0.0
      %315 = vmatpush1.msra.mxu0 0.0
      %316 = vmatprep.subr.mxu0 0.0
      %317 = vmatpush1.msra.mxu0 0.0
      %318 = vmatprep.subr.mxu0 0.0
      %319 = vmatpush1.msra.mxu0 0.0
      %320 = vmatprep.subr.mxu0 0.0
      %321 = vmatpush1.msra.mxu0 0.0
      %322 = vmatprep.subr.mxu0 0.0
      %323 = vmatpush1.msra.mxu0 0.0
      %324 = vmatprep.subr.mxu0 0.0
      %325 = vmatpush1.msra.mxu0 0.0
      %326 = vmatprep.subr.mxu0 0.0
      %327 = vmatpush1.msra.mxu0 0.0
      %328 = vmatprep.subr.mxu0 0.0
      %329 = vmatpush1.msra.mxu0 0.0
      %330 = vmatprep.subr.mxu0 0.0
      %331 = vmatpush1.msra.mxu0 0.0
      %332 = vmatprep.subr.mxu0 0.0
      %333 = vmatpush1.msra.mxu0 0.0
      %334 = vmatprep.subr.mxu0 0.0
      %335 = vmatpush1.msra.mxu0 0.0
      %336 = vmatprep.subr.mxu0 0.0
      %337 = vmatpush1.msra.mxu0 0.0
      %338 = vmatprep.subr.mxu0 0.0
      %339 = vmatpush1.msra.mxu0 0.0
      %340 = vmatprep.subr.mxu0 0.0
      %341 = vmatpush1.msra.mxu0 0.0
      %342 = vmatprep.subr.mxu0 0.0
      %343 = vmatpush1.msra.mxu0 0.0
      %344 = vmatprep.subr.mxu0 0.0
      %345 = vmatpush1.msra.mxu0 0.0
      %346 = vmatprep.subr.mxu0 0.0
      %347 = vmatpush1.msra.mxu0 0.0
      %348 = vmatprep.subr.mxu0 0.0
      %349 = vmatpush1.msra.mxu0 0.0
      %350 = vmatprep.subr.mxu0 0.0
      %351 = vmatpush1.msra.mxu0 0.0
      %352 = vmatprep.subr.mxu0 0.0
      %353 = vmatpush1.msra.mxu0 0.0
      %354 = vmatprep.subr.mxu0 0.0
      %355 = vmatpush1.msra.mxu0 0.0
      %356 = vmatprep.subr.mxu0 0.0
      %357 = vmatpush1.msra.mxu0 0.0
      %358 = vmatprep.subr.mxu0 0.0
      %359 = vmatpush1.msra.mxu0 0.0
      %360 = vmatprep.subr.mxu0 0.0
      %361 = vmatpush1.msra.mxu0 0.0
      %362 = vmatprep.mubr.f32.mxu0 0.0
      %363 = vmatmul.mubr.f32.gmra.mrb[0].mxu0 %v296
      %v364 = vpop.f32.mrb[0].mxu0
      %v365 = vadd.f32 %v292, %v364
      %v366 = vpop.f32.mrb[0].mxu0
      %v367 = vadd.f32 %v292, %v366
      %368 = vdwg.mxu0
      %v369 = vmul.f32 %v365, 0.5
      %v370 = vmul.f32 %v367, 0.5
      %v371 = vmul.f32 %v365, 0.70710677
      %v372 = vmul.f32 %v367, 0.70710677
      %v373 = verf.f32.pop %v371
      %v374 = verf.f32.pop %v372
      %v375 = vadd.f32 %v373, 1.0
      %v376 = vadd.f32 %v374, 1.0
      %v377 = vmul.f32 %v369, %v375
      %v378 = vmul.f32 %v370, %v376
      %v379 = vld [vmem:[%s2 + $0x8] sm:$0xff]
      %v380 = vld [vmem:[%s3 + $0x8] sm:$0xff]
      %382 = vset.pattern.permute.xlu0 0
      %383 = vperm.xlu0 %382, %v380
      %v384 = vpop.permute.xlu0 %383
      %v387 = vsel %vm294, %v379, 0
      %389 = vmatprep.subr.mxu0 %v378
      %390 = vmatpush1.msra.mxu0 %v377
      %391 = vmatprep.subr.mxu0 0.0
      %392 = vmatpush1.msra.mxu0 0.0
      %393 = vmatprep.subr.mxu0 0.0
      %394 = vmatpush1.msra.mxu0 0.0
      %395 = vmatprep.subr.mxu0 0.0
      %396 = vmatpush1.msra.mxu0 0.0
      %397 = vmatprep.subr.mxu0 0.0
      %398 = vmatpush1.msra.mxu0 0.0
      %399 = vmatprep.subr.mxu0 0.0
      %400 = vmatpush1.msra.mxu0 0.0
      %401 = vmatprep.subr.mxu0 0.0
      %402 = vmatpush1.msra.mxu0 0.0
      %403 = vmatprep.subr.mxu0 0.0
      %404 = vmatpush1.msra.mxu0 0.0
      %405 = vmatprep.subr.mxu0 0.0
      %406 = vmatpush1.msra.mxu0 0.0
      %407 = vmatprep.subr.mxu0 0.0
      %408 = vmatpush1.msra.mxu0 0.0
      %409 = vmatprep.subr.mxu0 0.0
      %410 = vmatpush1.msra.mxu0 0.0
      %411 = vmatprep.subr.mxu0 0.0
      %412 = vmatpush1.msra.mxu0 0.0
      %413 = vmatprep.subr.mxu0 0.0
      %414 = vmatpush1.msra.mxu0 0.0
      %415 = vmatprep.subr.mxu0 0.0
      %416 = vmatpush1.msra.mxu0 0.0
      %417 = vmatprep.subr.mxu0 0.0
      %418 = vmatpush1.msra.mxu0 0.0
      %419 = vmatprep.subr.mxu0 0.0
      %420 = vmatpush1.msra.mxu0 0.0
      %421 = vmatprep.subr.mxu0 0.0
      %422 = vmatpush1.msra.mxu0 0.0
      %423 = vmatprep.subr.mxu0 0.0
      %424 = vmatpush1.msra.mxu0 0.0
      %425 = vmatprep.subr.mxu0 0.0
      %426 = vmatpush1.msra.mxu0 0.0
      %427 = vmatprep.subr.mxu0 0.0
      %428 = vmatpush1.msra.mxu0 0.0
      %429 = vmatprep.subr.mxu0 0.0
      %430 = vmatpush1.msra.mxu0 0.0
      %431 = vmatprep.subr.mxu0 0.0
      %432 = vmatpush1.msra.mxu0 0.0
      %433 = vmatprep.subr.mxu0 0.0
      %434 = vmatpush1.msra.mxu0 0.0
      %435 = vmatprep.subr.mxu0 0.0
      %436 = vmatpush1.msra.mxu0 0.0
      %437 = vmatprep.subr.mxu0 0.0
      %438 = vmatpush1.msra.mxu0 0.0
      %439 = vmatprep.subr.mxu0 0.0
      %440 = vmatpush1.msra.mxu0 0.0
      %441 = vmatprep.subr.mxu0 0.0
      %442 = vmatpush1.msra.mxu0 0.0
      %443 = vmatprep.subr.mxu0 0.0
      %444 = vmatpush1.msra.mxu0 0.0
      %445 = vmatprep.subr.mxu0 0.0
      %446 = vmatpush1.msra.mxu0 0.0
      %447 = vmatprep.subr.mxu0 0.0
      %448 = vmatpush1.msra.mxu0 0.0
      %449 = vmatprep.subr.mxu0 0.0
      %450 = vmatpush1.msra.mxu0 0.0
      %451 = vmatprep.subr.mxu0 0.0
      %452 = vmatpush1.msra.mxu0 0.0
      %453 = vmatprep.mubr.f32.mxu0 0.0
      %454 = vmatmul.mubr.f32.gmra.mrb[0].mxu0 %v387
      %v455 = vpop.f32.mrb[0].mxu0
      %v456 = vadd.f32 %v384, %v455
      %v457 = vpop.f32.mrb[0].mxu0
      %v458 = vadd.f32 %v384, %v457
      %459 = vdwg.mxu0
      %v460 = vmul.f32 %v456, 0.5
      %v461 = vmul.f32 %v458, 0.5
      %v462 = vmul.f32 %v456, 0.70710677
      %v463 = vmul.f32 %v458, 0.70710677
      %v464 = verf.f32.pop %v462
      %v465 = verf.f32.pop %v463
      %v466 = vadd.f32 %v464, 1.0
      %v467 = vadd.f32 %v465, 1.0
      %v468 = vmul.f32 %v460, %v466
      %v469 = vmul.f32 %v461, %v467
      %v470 = vld [vmem:[%s2 + $0x10] sm:$0xff]
      %v471 = vld [vmem:[%s3 + $0x10] sm:$0xff]
      %473 = vset.pattern.permute.xlu0 0
      %474 = vperm.xlu0 %473, %v471
      %v475 = vpop.permute.xlu0 %474
      %v478 = vsel %vm294, %v470, 0
      %480 = vmatprep.subr.mxu0 %v469
      %481 = vmatpush1.msra.mxu0 %v468
      %482 = vmatprep.subr.mxu0 0.0
      %483 = vmatpush1.msra.mxu0 0.0
      %484 = vmatprep.subr.mxu0 0.0
      %485 = vmatpush1.msra.mxu0 0.0
      %486 = vmatprep.subr.mxu0 0.0
      %487 = vmatpush1.msra.mxu0 0.0
      %488 = vmatprep.subr.mxu0 0.0
      %489 = vmatpush1.msra.mxu0 0.0
      %490 = vmatprep.subr.mxu0 0.0
      %491 = vmatpush1.msra.mxu0 0.0
      %492 = vmatprep.subr.mxu0 0.0
      %493 = vmatpush1.msra.mxu0 0.0
      %494 = vmatprep.subr.mxu0 0.0
      %495 = vmatpush1.msra.mxu0 0.0
      %496 = vmatprep.subr.mxu0 0.0
      %497 = vmatpush1.msra.mxu0 0.0
      %498 = vmatprep.subr.mxu0 0.0
      %499 = vmatpush1.msra.mxu0 0.0
      %500 = vmatprep.subr.mxu0 0.0
      %501 = vmatpush1.msra.mxu0 0.0
      %502 = vmatprep.subr.mxu0 0.0
      %503 = vmatpush1.msra.mxu0 0.0
      %504 = vmatprep.subr.mxu0 0.0
      %505 = vmatpush1.msra.mxu0 0.0
      %506 = vmatprep.subr.mxu0 0.0
      %507 = vmatpush1.msra.mxu0 0.0
      %508 = vmatprep.subr.mxu0 0.0
      %509 = vmatpush1.msra.mxu0 0.0
      %510 = vmatprep.subr.mxu0 0.0
      %511 = vmatpush1.msra.mxu0 0.0
      %512 = vmatprep.subr.mxu0 0.0
      %513 = vmatpush1.msra.mxu0 0.0
      %514 = vmatprep.subr.mxu0 0.0
      %515 = vmatpush1.msra.mxu0 0.0
      %516 = vmatprep.subr.mxu0 0.0
      %517 = vmatpush1.msra.mxu0 0.0
      %518 = vmatprep.subr.mxu0 0.0
      %519 = vmatpush1.msra.mxu0 0.0
      %520 = vmatprep.subr.mxu0 0.0
      %521 = vmatpush1.msra.mxu0 0.0
      %522 = vmatprep.subr.mxu0 0.0
      %523 = vmatpush1.msra.mxu0 0.0
      %524 = vmatprep.subr.mxu0 0.0
      %525 = vmatpush1.msra.mxu0 0.0
      %526 = vmatprep.subr.mxu0 0.0
      %527 = vmatpush1.msra.mxu0 0.0
      %528 = vmatprep.subr.mxu0 0.0
      %529 = vmatpush1.msra.mxu0 0.0
      %530 = vmatprep.subr.mxu0 0.0
      %531 = vmatpush1.msra.mxu0 0.0
      %532 = vmatprep.subr.mxu0 0.0
      %533 = vmatpush1.msra.mxu0 0.0
      %534 = vmatprep.subr.mxu0 0.0
      %535 = vmatpush1.msra.mxu0 0.0
      %536 = vmatprep.subr.mxu0 0.0
      %537 = vmatpush1.msra.mxu0 0.0
      %538 = vmatprep.subr.mxu0 0.0
      %539 = vmatpush1.msra.mxu0 0.0
      %540 = vmatprep.subr.mxu0 0.0
      %541 = vmatpush1.msra.mxu0 0.0
      %542 = vmatprep.subr.mxu0 0.0
      %543 = vmatpush1.msra.mxu0 0.0
      %544 = vmatprep.mubr.f32.mxu0 0.0
      %545 = vmatmul.mubr.f32.gmra.mrb[0].mxu0 %v478
      %v546 = vpop.f32.mrb[0].mxu0
      %v547 = vadd.f32 %v475, %v546
      %v548 = vpop.f32.mrb[0].mxu0
      %v549 = vadd.f32 %v475, %v548
      %550 = vdwg.mxu0
      %v551 = vmul.f32 %v547, 0.5
      %v552 = vmul.f32 %v549, 0.5
      %v553 = vmul.f32 %v547, 0.70710677
      %v554 = vmul.f32 %v549, 0.70710677
      %v555 = verf.f32.pop %v553
      %v556 = verf.f32.pop %v554
      %v557 = vadd.f32 %v555, 1.0
      %v558 = vadd.f32 %v556, 1.0
      %v559 = vmul.f32 %v551, %v557
      %v560 = vmul.f32 %v552, %v558
      %v561 = vadd.f32 %v285, %v559
      %v562 = vadd.f32 %v286, %v560
      %v563 = vld [vmem:[%s2 + $0x18] sm:$0xff]
      %v564 = vld [vmem:[%s3 + $0x18] sm:$0xff]
      %566 = vset.pattern.permute.xlu0 0
      %567 = vperm.xlu0 %566, %v564
      %v568 = vpop.permute.xlu0 %567
      %v571 = vsel %vm294, %v563, 0
      %573 = vmatprep.subr.mxu0 %v562
      %574 = vmatpush1.msra.mxu0 %v561
      %575 = vmatprep.subr.mxu0 0.0
      %576 = vmatpush1.msra.mxu0 0.0
      %577 = vmatprep.subr.mxu0 0.0
      %578 = vmatpush1.msra.mxu0 0.0
      %579 = vmatprep.subr.mxu0 0.0
      %580 = vmatpush1.msra.mxu0 0.0
      %581 = vmatprep.subr.mxu0 0.0
      %582 = vmatpush1.msra.mxu0 0.0
      %583 = vmatprep.subr.mxu0 0.0
      %584 = vmatpush1.msra.mxu0 0.0
      %585 = vmatprep.subr.mxu0 0.0
      %586 = vmatpush1.msra.mxu0 0.0
      %587 = vmatprep.subr.mxu0 0.0
      %588 = vmatpush1.msra.mxu0 0.0
      %589 = vmatprep.subr.mxu0 0.0
      %590 = vmatpush1.msra.mxu0 0.0
      %591 = vmatprep.subr.mxu0 0.0
      %592 = vmatpush1.msra.mxu0 0.0
      %593 = vmatprep.subr.mxu0 0.0
      %594 = vmatpush1.msra.mxu0 0.0
      %595 = vmatprep.subr.mxu0 0.0
      %596 = vmatpush1.msra.mxu0 0.0
      %597 = vmatprep.subr.mxu0 0.0
      %598 = vmatpush1.msra.mxu0 0.0
      %599 = vmatprep.subr.mxu0 0.0
      %600 = vmatpush1.msra.mxu0 0.0
      %601 = vmatprep.subr.mxu0 0.0
      %602 = vmatpush1.msra.mxu0 0.0
      %603 = vmatprep.subr.mxu0 0.0
      %604 = vmatpush1.msra.mxu0 0.0
      %605 = vmatprep.subr.mxu0 0.0
      %606 = vmatpush1.msra.mxu0 0.0
      %607 = vmatprep.subr.mxu0 0.0
      %608 = vmatpush1.msra.mxu0 0.0
      %609 = vmatprep.subr.mxu0 0.0
      %610 = vmatpush1.msra.mxu0 0.0
      %611 = vmatprep.subr.mxu0 0.0
      %612 = vmatpush1.msra.mxu0 0.0
      %613 = vmatprep.subr.mxu0 0.0
      %614 = vmatpush1.msra.mxu0 0.0
      %615 = vmatprep.subr.mxu0 0.0
      %616 = vmatpush1.msra.mxu0 0.0
      %617 = vmatprep.subr.mxu0 0.0
      %618 = vmatpush1.msra.mxu0 0.0
      %619 = vmatprep.subr.mxu0 0.0
      %620 = vmatpush1.msra.mxu0 0.0
      %621 = vmatprep.subr.mxu0 0.0
      %622 = vmatpush1.msra.mxu0 0.0
      %623 = vmatprep.subr.mxu0 0.0
      %624 = vmatpush1.msra.mxu0 0.0
      %625 = vmatprep.subr.mxu0 0.0
      %626 = vmatpush1.msra.mxu0 0.0
      %627 = vmatprep.subr.mxu0 0.0
      %628 = vmatpush1.msra.mxu0 0.0
      %629 = vmatprep.subr.mxu0 0.0
      %630 = vmatpush1.msra.mxu0 0.0
      %631 = vmatprep.subr.mxu0 0.0
      %632 = vmatpush1.msra.mxu0 0.0
      %633 = vmatprep.subr.mxu0 0.0
      %634 = vmatpush1.msra.mxu0 0.0
      %635 = vmatprep.subr.mxu0 0.0
      %636 = vmatpush1.msra.mxu0 0.0
      %637 = vmatprep.mubr.f32.mxu0 0.0
      %638 = vmatmul.mubr.f32.gmra.mrb[0].mxu0 %v571
      %v639 = vpop.f32.mrb[0].mxu0
      %v640 = vadd.f32 %v568, %v639
      %v641 = vpop.f32.mrb[0].mxu0
      %v642 = vadd.f32 %v568, %v641
      %643 = vdwg.mxu0
      %v644 = vmul.f32 %v640, 0.5
      %v645 = vmul.f32 %v642, 0.5
      %v646 = vmul.f32 %v640, 0.70710677
      %v647 = vmul.f32 %v642, 0.70710677
      %v648 = verf.f32.pop %v646
      %v649 = verf.f32.pop %v647
      %v650 = vadd.f32 %v648, 1.0
      %v651 = vadd.f32 %v649, 1.0
      %v652 = vmul.f32 %v644, %v650
      %v653 = vmul.f32 %v645, %v651
      %v654 = vld [vmem:[%s2 + $0x20] sm:$0xff]
      %v655 = vld [vmem:[%s2 + $0x28] sm:$0x1]
      %v656 = vld [vmem:[%s3 + $0x20] sm:$0xff]
      %v657 = vld [vmem:[%s3 + $0x28] sm:$0x1]
      %659 = vset.pattern.permute.xlu0 0
      %660 = vperm.xlu0 %659, %v656
      %v661 = vpop.permute.xlu0 %660
      %664 = vset.pattern.permute.xlu0 0
      %665 = vperm.xlu0 %664, %v657
      %v666 = vpop.permute.xlu0 %665
      %v669 = vsel %vm294, %v654, 0
      %v672 = vsel %vm294, %v655, 0
      %674 = vmatprep.subr.mxu0 %v653
      %675 = vmatpush1.msra.mxu0 %v652
      %676 = vmatprep.subr.mxu0 0.0
      %677 = vmatpush1.msra.mxu0 0.0
      %678 = vmatprep.subr.mxu0 0.0
      %679 = vmatpush1.msra.mxu0 0.0
      %680 = vmatprep.subr.mxu0 0.0
      %681 = vmatpush1.msra.mxu0 0.0
      %682 = vmatprep.subr.mxu0 0.0
      %683 = vmatpush1.msra.mxu0 0.0
      %684 = vmatprep.subr.mxu0 0.0
      %685 = vmatpush1.msra.mxu0 0.0
      %686 = vmatprep.subr.mxu0 0.0
      %687 = vmatpush1.msra.mxu0 0.0
      %688 = vmatprep.subr.mxu0 0.0
      %689 = vmatpush1.msra.mxu0 0.0
      %690 = vmatprep.subr.mxu0 0.0
      %691 = vmatpush1.msra.mxu0 0.0
      %692 = vmatprep.subr.mxu0 0.0
      %693 = vmatpush1.msra.mxu0 0.0
      %694 = vmatprep.subr.mxu0 0.0
      %695 = vmatpush1.msra.mxu0 0.0
      %696 = vmatprep.subr.mxu0 0.0
      %697 = vmatpush1.msra.mxu0 0.0
      %698 = vmatprep.subr.mxu0 0.0
      %699 = vmatpush1.msra.mxu0 0.0
      %700 = vmatprep.subr.mxu0 0.0
      %701 = vmatpush1.msra.mxu0 0.0
      %702 = vmatprep.subr.mxu0 0.0
      %703 = vmatpush1.msra.mxu0 0.0
      %704 = vmatprep.subr.mxu0 0.0
      %705 = vmatpush1.msra.mxu0 0.0
      %706 = vmatprep.subr.mxu0 0.0
      %707 = vmatpush1.msra.mxu0 0.0
      %708 = vmatprep.subr.mxu0 0.0
      %709 = vmatpush1.msra.mxu0 0.0
      %710 = vmatprep.subr.mxu0 0.0
      %711 = vmatpush1.msra.mxu0 0.0
      %712 = vmatprep.subr.mxu0 0.0
      %713 = vmatpush1.msra.mxu0 0.0
      %714 = vmatprep.subr.mxu0 0.0
      %715 = vmatpush1.msra.mxu0 0.0
      %716 = vmatprep.subr.mxu0 0.0
      %717 = vmatpush1.msra.mxu0 0.0
      %718 = vmatprep.subr.mxu0 0.0
      %719 = vmatpush1.msra.mxu0 0.0
      %720 = vmatprep.subr.mxu0 0.0
      %721 = vmatpush1.msra.mxu0 0.0
      %722 = vmatprep.subr.mxu0 0.0
      %723 = vmatpush1.msra.mxu0 0.0
      %724 = vmatprep.subr.mxu0 0.0
      %725 = vmatpush1.msra.mxu0 0.0
      %726 = vmatprep.subr.mxu0 0.0
      %727 = vmatpush1.msra.mxu0 0.0
      %728 = vmatprep.subr.mxu0 0.0
      %729 = vmatpush1.msra.mxu0 0.0
      %730 = vmatprep.subr.mxu0 0.0
      %731 = vmatpush1.msra.mxu0 0.0
      %732 = vmatprep.subr.mxu0 0.0
      %733 = vmatpush1.msra.mxu0 0.0
      %734 = vmatprep.subr.mxu0 0.0
      %735 = vmatpush1.msra.mxu0 0.0
      %736 = vmatprep.subr.mxu0 0.0
      %737 = vmatpush1.msra.mxu0 0.0
      %738 = vmatprep.mubr.f32.mxu0 0.0
      %739 = vmatmul.mubr.f32.gmra.mrb[0].mxu0 %v669
      %v740 = vpop.f32.mrb[0].mxu0
      %v741 = vadd.f32 %v661, %v740
      %v742 = vpop.f32.mrb[0].mxu0
      %v743 = vadd.f32 %v661, %v742
      %744 = vmatprep.mubr.f32.mxu0 0.0
      %745 = vmatmul.mubr.f32.gmra.mrb[0].mxu0 %v672
      %v746 = vpop.f32.mrb[0].mxu0
      %v747 = vadd.f32 %v666, %v746
      %v748 = vpop.f32.mrb[0].mxu0
      %v749 = vadd.f32 %v666, %v748
      %750 = vdwg.mxu0
      %751 = vst [vmem:[%s271] sm:$0xff] %v741
      %752 = vst [vmem:[%s271 + $0x8] sm:$0xff] %v743
      %753 = vst [vmem:[%s271 + $0x10] sm:$0x1] %v747
      %754 = vst [vmem:[%s271 + $0x18] sm:$0x1] %v749
      %s755 = smul.u32 2, %s20
      %p756 = scmp.lt.s32.totalorder %s19, 1
      %s757 = scalar_select %p756, %s19, 1
      %p758 = scmp.lt.s32.totalorder %s755, 1
      %s759 = scalar_select %p758, %s755, 1
      %s760 = smul.addr %s757, 4
      %s761 = sadd.s32 %s759, %s760
      %s762 = smul.addr %s761, 8
      %s763 = scalar_lea.vmem %s4, %s762
      // Predicated region
      $region37: #{tpu_custom_call.1} parent=35 // pred_check
        %p764 = pneg %p145
      $region38: #{tpu_custom_call.1} parent=35 // pred_check_branch
        %766 = sbr.rel (%p764) target = $region40
      $region39: #{tpu_custom_call.1} parent=35 // pred_region
        %s767 = smul.u32 2, %s20
      $region40: #{tpu_custom_call.1} parent=35 // pred_fallthru
        _
    $region36: #{tpu_custom_call.1} parent=5 // pred_fallthru
      _
    %p768 = scmp.le.s32.totalorder 2, %s10
    // Predicated region
    $region41: #{tpu_custom_call.1} parent=5 // pred_check
      %p769 = pneg %p768
    $region42: #{tpu_custom_call.1} parent=5 // pred_check_branch
      %771 = sbr.rel (%p769) target = $region44
    $region43: #{tpu_custom_call.1} parent=5 // pred_region
      %s772 = ssub.s32 %s10, 2
      // Predicated region
      $region45: #{tpu_custom_call.1} parent=43 // pred_check
        %p773 = pneg %p151
      $region46: #{tpu_custom_call.1} parent=43 // pred_check_branch
        %775 = sbr.rel (%p773) target = $region48
      $region47: #{tpu_custom_call.1} parent=43 // pred_region
        %s776 = smul.u32 2, %s22
        %p777 = scmp.lt.s32.totalorder %s21, 1
        %s778 = scalar_select %p777, %s21, 1
        %p779 = scmp.lt.s32.totalorder %s776, 1
        %s780 = scalar_select %p779, %s776, 1
        %s781 = smul.addr %s778, 4
        %s782 = sadd.s32 %s780, %s781
        %s783 = smul.addr %s782, 8
        %s784 = scalar_lea.vmem %s4, %s783
      $region48: #{tpu_custom_call.1} parent=43 // pred_fallthru
        _
    $region44: #{tpu_custom_call.1} parent=5 // pred_fallthru
      _
  $region6: #{tpu_custom_call.1} parent=0 // loop_footer
    %s14 = sadd.s32 1, %s10
  $region7: #{tpu_custom_call.1} parent=0 // loop_footer_branch
    %9 = sbr.rel target = $region3
  $region8: #{tpu_custom_call.1} parent=0 // loop_exit
    _

</llo_original>
